<compile_context>
chip_gen: v5e
topology: v5e:2x2
jax: 0.10.0
libtpu: 0.0.40
codegen_flags: <defaults>
</compile_context>

<pallas_src>
import functools

import jax
import jax.numpy as jnp
from jax.experimental import pallas as pl
from jax.experimental.pallas import tpu as pltpu


def _round_up(n, m):
    return (n + m - 1) // m * m


def mlp_actor_kernel(x_ref, w_ref, b_ref, o_ref, *, num_layers):
    """x_ref: (TB, Dp); w_ref: (L, Dp, Dp); b_ref: (L, 1, Dp); o_ref: (TB, Dp)."""
    h = x_ref[...]  # f32 activations
    for l in range(num_layers):  # static unroll (num_layers known at trace time)
        w = w_ref[l]             # (Dp, Dp), f32 or bf16
        z = jnp.dot(h.astype(w.dtype), w,
                    preferred_element_type=jnp.float32) + b_ref[l]
        if l < num_layers - 1:
            h = jnp.tanh(z)      # f32 on the EUP
        else:
            # Numerically-stable log-softmax.  Padded action lanes carry a
            # -1e30 bias, so they never win the max and exp() underflows to 0.
            m = jnp.max(z, axis=-1, keepdims=True)
            shifted = z - m
            lse = jnp.log(jnp.sum(jnp.exp(shifted), axis=-1, keepdims=True))
            o_ref[...] = (shifted - lse).astype(o_ref.dtype)


def _pack_params(w_in, b_in, w_hid, b_hid, w_out, b_out, dp, weight_dtype):
    """Stack all layers into one padded (L, dp, dp) weight + (L, 1, dp) bias."""
    S, H = w_in.shape
    A = w_out.shape[1]
    n_hidden = w_hid.shape[0]
    n_layers = n_hidden + 2

    W = jnp.zeros((n_layers, dp, dp), jnp.float32)
    B = jnp.zeros((n_layers, 1, dp), jnp.float32)

    W = W.at[0, :S, :H].set(w_in.astype(jnp.float32))
    B = B.at[0, 0, :H].set(jnp.reshape(b_in, (-1,)).astype(jnp.float32))
    for i in range(n_hidden):
        W = W.at[1 + i, :H, :H].set(w_hid[i].astype(jnp.float32))
        B = B.at[1 + i, 0, :H].set(jnp.reshape(b_hid[i], (-1,)).astype(jnp.float32))
    W = W.at[n_layers - 1, :H, :A].set(w_out.astype(jnp.float32))
    B = B.at[n_layers - 1, 0, :A].set(jnp.reshape(b_out, (-1,)).astype(jnp.float32))
    # Mask padded action lanes out of the log-softmax.
    if A < dp:
        B = B.at[n_layers - 1, 0, A:].set(-1e30)

    return W.astype(weight_dtype), B  # biases stay f32 (added post-accumulate)


def mlp_actor_forward(x, w_in, b_in, w_hid, b_hid, w_out, b_out, *,
                      weight_dtype=jnp.float32, tile_batch=256):
    """Full MLP-actor forward in one pallas_call.

    x: (B, S) f32.  w_in: (S, H), w_hid: (L, H, H), w_out: (H, A);
    biases: (H,), (L, H), (A,) (or any reshapable equivalent).
    Returns (B, A) log-probabilities, f32.
    """
    B, S = x.shape
    H = w_in.shape[1]
    A = w_out.shape[1]
    n_layers = w_hid.shape[0] + 2

    # Lane-dense common feature width (multiple of 128).
    dp = _round_up(max(S, H, A), 128)
    # Batch tile (multiple of 8 sublanes); pad batch up to a whole number of tiles.
    tb = min(int(tile_batch), _round_up(B, 8))
    bp = _round_up(B, tb)

    x_pad = jnp.zeros((bp, dp), jnp.float32).at[:B, :S].set(x.astype(jnp.float32))
    W, Bias = _pack_params(w_in, b_in, w_hid, b_hid, w_out, b_out, dp, weight_dtype)

    kernel = functools.partial(mlp_actor_kernel, num_layers=n_layers)

    w_bytes = int(W.size) * jnp.dtype(weight_dtype).itemsize
    cost = pl.CostEstimate(
        flops=int(2 * bp * dp * dp * n_layers),
        transcendentals=int(bp * dp * n_layers),
        bytes_accessed=int(x_pad.size * 4 + w_bytes + Bias.size * 4 + bp * dp * 4),
    )

    out = pl.pallas_call(
        kernel,
        out_shape=jax.ShapeDtypeStruct((bp, dp), jnp.float32),
        grid_spec=pltpu.PrefetchScalarGridSpec(
            num_scalar_prefetch=0,
            grid=(bp // tb,),
            in_specs=[
                pl.BlockSpec((tb, dp), lambda i: (i, 0)),                # x tile
                pl.BlockSpec((n_layers, dp, dp), lambda i: (0, 0, 0)),   # weights (resident)
                pl.BlockSpec((n_layers, 1, dp), lambda i: (0, 0, 0)),    # biases  (resident)
            ],
            out_specs=pl.BlockSpec((tb, dp), lambda i: (i, 0)),          # lane-dense output
        ),
        compiler_params=pltpu.CompilerParams(
            dimension_semantics=("parallel",)),                          # megacore on v7x
        cost_estimate=cost,
    )(x_pad, W, Bias)

    return out[:B, :A]


def reference_forward(x, w_in, b_in, w_hid, b_hid, w_out, b_out):
    h = jnp.tanh(x @ w_in + b_in)
    for i in range(w_hid.shape[0]):
        h = jnp.tanh(h @ w_hid[i] + b_hid[i])
    logits = h @ w_out + b_out
    return jax.nn.log_softmax(logits, axis=-1)


if __name__ == "__main__":
    # Small, forward-consistent shapes.
    BATCH = 8
    NUM_STATES = 16        # args.Number_States
    HIDDEN = 32            # args.hidden_size
    NUM_HIDDEN_LAYERS = 2  # args.hidden_layer
    NUM_ACTIONS = 8        # args.Number_Actions

    key = jax.random.PRNGKey(0)
    k_x, k_in, k_h, k_out = jax.random.split(key, 4)

    # Deterministic orthogonal init (gain=1.0 hidden stack, 0.01 actor output).
    ortho = jax.nn.initializers.orthogonal(scale=1.0)
    ortho_out = jax.nn.initializers.orthogonal(scale=0.01)

    w_in = ortho(k_in, (NUM_STATES, HIDDEN), jnp.float32)
    b_in = jnp.zeros((HIDDEN,), jnp.float32)

    hid_keys = jax.random.split(k_h, NUM_HIDDEN_LAYERS)
    w_hid = jnp.stack([ortho(hk, (HIDDEN, HIDDEN), jnp.float32) for hk in hid_keys])
    b_hid = jnp.zeros((NUM_HIDDEN_LAYERS, HIDDEN), jnp.float32)

    w_out = ortho_out(k_out, (HIDDEN, NUM_ACTIONS), jnp.float32)
    b_out = jnp.zeros((NUM_ACTIONS,), jnp.float32)

    x = jax.random.normal(k_x, (BATCH, NUM_STATES), jnp.float32)

    ref = reference_forward(x, w_in, b_in, w_hid, b_hid, w_out, b_out)

    # f32 weights: exact-ish match vs reference.
    out = mlp_actor_forward(x, w_in, b_in, w_hid, b_hid, w_out, b_out)
    out = jax.block_until_ready(out)
    assert out.shape == (BATCH, NUM_ACTIONS)
    assert jnp.allclose(out, ref, atol=1e-5, rtol=1e-5), "f32 mismatch vs reference"

    # bf16 weight stack (v6e/v7x MXU fast path), f32 accumulate + f32 elementwise.
    out_bf16 = mlp_actor_forward(x, w_in, b_in, w_hid, b_hid, w_out, b_out,
                                 weight_dtype=jnp.bfloat16)
    out_bf16 = jax.block_until_ready(out_bf16)
    assert jnp.allclose(out_bf16, ref, atol=5e-2, rtol=5e-2), "bf16 mismatch vs reference"

    print("KERNEL_OK")
</pallas_src>

<mosaic_0001>
module attributes {stable_mosaic.version = 11 : i64} {
  func.func @mlp_actor_kernel(%arg0: i32, %arg1: memref<8x128xf32, #tpu.memory_space<vmem>>, %arg2: memref<4x128x128xf32, #tpu.memory_space<vmem>>, %arg3: memref<4x1x128xf32, #tpu.memory_space<vmem>>, %arg4: memref<8x128xf32, #tpu.memory_space<vmem>>) attributes {dimension_semantics = [#tpu.dimension_semantics<parallel>], iteration_bounds = array<i64: 1>, scalar_prefetch = 0 : i64, scratch_operands = 0 : i64, tpu.core_type = #tpu.core_type<tc>, window_params = [{transform_indices = @transform_0, window_bounds = array<i64: 8, 128>}, {pipeline_mode = #tpu.pipeline_mode<synchronous>, transform_indices = @transform_1, window_bounds = array<i64: 4, 128, 128>}, {pipeline_mode = #tpu.pipeline_mode<synchronous>, transform_indices = @transform_2, window_bounds = array<i64: 4, 1, 128>}, {transform_indices = @transform_3, window_bounds = array<i64: 8, 128>}]} {
    %c0 = arith.constant 0 : index
    %c0_0 = arith.constant 0 : index
    %0 = vector.load %arg1[%c0, %c0_0] : memref<8x128xf32, #tpu.memory_space<vmem>>, vector<8x128xf32>
    %c0_1 = arith.constant 0 : index
    %c0_2 = arith.constant 0 : index
    %c0_3 = arith.constant 0 : index
    %1 = vector.load %arg2[%c0_1, %c0_2, %c0_3] : memref<4x128x128xf32, #tpu.memory_space<vmem>>, vector<1x128x128xf32>
    %2 = vector.shape_cast %1 : vector<1x128x128xf32> to vector<128x128xf32>
    %cst = arith.constant dense<0.000000e+00> : vector<8x128xf32>
    %3 = tpu.matmul %0, %2, %cst {dimension_numbers = #tpu.dot_dimension_numbers<[1], [0], [0], [1], [0, 0, 1, 1], [], []>} : vector<8x128xf32>, vector<128x128xf32>, vector<8x128xf32> -> vector<8x128xf32>
    %c0_4 = arith.constant 0 : index
    %c0_5 = arith.constant 0 : index
    %c0_6 = arith.constant 0 : index
    %4 = vector.load %arg3[%c0_4, %c0_5, %c0_6] : memref<4x1x128xf32, #tpu.memory_space<vmem>>, vector<1x1x128xf32>
    %5 = vector.shape_cast %4 : vector<1x1x128xf32> to vector<1x128xf32>
    %6 = vector.broadcast %5 : vector<1x128xf32> to vector<8x128xf32>
    %7 = arith.addf %3, %6 : vector<8x128xf32>
    %8 = math.tanh %7 : vector<8x128xf32>
    %c1 = arith.constant 1 : index
    %c0_7 = arith.constant 0 : index
    %c0_8 = arith.constant 0 : index
    %9 = vector.load %arg2[%c1, %c0_7, %c0_8] : memref<4x128x128xf32, #tpu.memory_space<vmem>>, vector<1x128x128xf32>
    %10 = vector.shape_cast %9 : vector<1x128x128xf32> to vector<128x128xf32>
    %cst_9 = arith.constant dense<0.000000e+00> : vector<8x128xf32>
    %11 = tpu.matmul %8, %10, %cst_9 {dimension_numbers = #tpu.dot_dimension_numbers<[1], [0], [0], [1], [0, 0, 1, 1], [], []>} : vector<8x128xf32>, vector<128x128xf32>, vector<8x128xf32> -> vector<8x128xf32>
    %c1_10 = arith.constant 1 : index
    %c0_11 = arith.constant 0 : index
    %c0_12 = arith.constant 0 : index
    %12 = vector.load %arg3[%c1_10, %c0_11, %c0_12] : memref<4x1x128xf32, #tpu.memory_space<vmem>>, vector<1x1x128xf32>
    %13 = vector.shape_cast %12 : vector<1x1x128xf32> to vector<1x128xf32>
    %14 = vector.broadcast %13 : vector<1x128xf32> to vector<8x128xf32>
    %15 = arith.addf %11, %14 : vector<8x128xf32>
    %16 = math.tanh %15 : vector<8x128xf32>
    %c2 = arith.constant 2 : index
    %c0_13 = arith.constant 0 : index
    %c0_14 = arith.constant 0 : index
    %17 = vector.load %arg2[%c2, %c0_13, %c0_14] : memref<4x128x128xf32, #tpu.memory_space<vmem>>, vector<1x128x128xf32>
    %18 = vector.shape_cast %17 : vector<1x128x128xf32> to vector<128x128xf32>
    %cst_15 = arith.constant dense<0.000000e+00> : vector<8x128xf32>
    %19 = tpu.matmul %16, %18, %cst_15 {dimension_numbers = #tpu.dot_dimension_numbers<[1], [0], [0], [1], [0, 0, 1, 1], [], []>} : vector<8x128xf32>, vector<128x128xf32>, vector<8x128xf32> -> vector<8x128xf32>
    %c2_16 = arith.constant 2 : index
    %c0_17 = arith.constant 0 : index
    %c0_18 = arith.constant 0 : index
    %20 = vector.load %arg3[%c2_16, %c0_17, %c0_18] : memref<4x1x128xf32, #tpu.memory_space<vmem>>, vector<1x1x128xf32>
    %21 = vector.shape_cast %20 : vector<1x1x128xf32> to vector<1x128xf32>
    %22 = vector.broadcast %21 : vector<1x128xf32> to vector<8x128xf32>
    %23 = arith.addf %19, %22 : vector<8x128xf32>
    %24 = math.tanh %23 : vector<8x128xf32>
    %c3 = arith.constant 3 : index
    %c0_19 = arith.constant 0 : index
    %c0_20 = arith.constant 0 : index
    %25 = vector.load %arg2[%c3, %c0_19, %c0_20] : memref<4x128x128xf32, #tpu.memory_space<vmem>>, vector<1x128x128xf32>
    %26 = vector.shape_cast %25 : vector<1x128x128xf32> to vector<128x128xf32>
    %cst_21 = arith.constant dense<0.000000e+00> : vector<8x128xf32>
    %27 = tpu.matmul %24, %26, %cst_21 {dimension_numbers = #tpu.dot_dimension_numbers<[1], [0], [0], [1], [0, 0, 1, 1], [], []>} : vector<8x128xf32>, vector<128x128xf32>, vector<8x128xf32> -> vector<8x128xf32>
    %c3_22 = arith.constant 3 : index
    %c0_23 = arith.constant 0 : index
    %c0_24 = arith.constant 0 : index
    %28 = vector.load %arg3[%c3_22, %c0_23, %c0_24] : memref<4x1x128xf32, #tpu.memory_space<vmem>>, vector<1x1x128xf32>
    %29 = vector.shape_cast %28 : vector<1x1x128xf32> to vector<1x128xf32>
    %30 = vector.broadcast %29 : vector<1x128xf32> to vector<8x128xf32>
    %31 = arith.addf %27, %30 : vector<8x128xf32>
    %cst_25 = arith.constant dense<0xFF800000> : vector<8xf32>
    %32 = vector.multi_reduction <maximumf>, %31, %cst_25 [1] : vector<8x128xf32> to vector<8xf32>
    %33 = vector.shape_cast %32 : vector<8xf32> to vector<8x1xf32>
    %34 = vector.broadcast %33 : vector<8x1xf32> to vector<8x128xf32>
    %35 = arith.subf %31, %34 : vector<8x128xf32>
    %36 = math.exp %35 : vector<8x128xf32>
    %cst_26 = arith.constant dense<0.000000e+00> : vector<8xf32>
    %37 = vector.multi_reduction <add>, %36, %cst_26 [1] : vector<8x128xf32> to vector<8xf32>
    %38 = vector.shape_cast %37 : vector<8xf32> to vector<8x1xf32>
    %39 = math.log %38 : vector<8x1xf32>
    %40 = vector.broadcast %39 : vector<8x1xf32> to vector<8x128xf32>
    %41 = arith.subf %35, %40 : vector<8x128xf32>
    %c0_27 = arith.constant 0 : index
    %c0_28 = arith.constant 0 : index
    %42 = vector.load %arg4[%c0_27, %c0_28] : memref<8x128xf32, #tpu.memory_space<vmem>>, vector<8x128xf32>
    tpu.vector_store %arg4[%c0_27, %c0_28], %41 {strides = array<i32>} : memref<8x128xf32, #tpu.memory_space<vmem>>, vector<8x128xf32>,
    return
  }
  func.func @transform_0(%arg0: i32) -> (i32, i32) {
    %c0_i32 = arith.constant 0 : i32
    %c0_i32_0 = arith.constant 0 : i32
    return %arg0, %c0_i32 : i32, i32
  }
  func.func @transform_1(%arg0: i32) -> (i32, i32, i32) {
    %c0_i32 = arith.constant 0 : i32
    %c0_i32_0 = arith.constant 0 : i32
    %c0_i32_1 = arith.constant 0 : i32
    %c0_i32_2 = arith.constant 0 : i32
    return %c0_i32, %c0_i32_0, %c0_i32_1 : i32, i32, i32
  }
  func.func @transform_2(%arg0: i32) -> (i32, i32, i32) {
    %c0_i32 = arith.constant 0 : i32
    %c0_i32_0 = arith.constant 0 : i32
    %c0_i32_1 = arith.constant 0 : i32
    %c0_i32_2 = arith.constant 0 : i32
    return %c0_i32, %c0_i32_0, %c0_i32_1 : i32, i32, i32
  }
  func.func @transform_3(%arg0: i32) -> (i32, i32) {
    %c0_i32 = arith.constant 0 : i32
    %c0_i32_0 = arith.constant 0 : i32
    return %arg0, %c0_i32 : i32, i32
  }
}

</mosaic_0001>

<llo_original>
// kernel: tpu_custom_call.1
$region0: #{tpu_custom_call.1}
  #allocation0 [shape = 'u32[]', space=smem, size = 0x4, offset = 0x4, fixed_abs, tag = 'smem constant byte address 0x4 - core index']
  #allocation1 [shape = 'u32[72,128]{1,0:T(1,128)}', space=vmem, size = 0x9000, scoped, tag = 'internal scratch']
  %s0 = inlined_call_operand.hbm [shape: f32[8,128], index: 0, kind: input, shape index: {}]
  %s1 = inlined_call_operand.hbm [shape: f32[4,128,128], index: 1, kind: input, shape index: {}]
  %s2 = inlined_call_operand.hbm [shape: f32[4,1,128], index: 2, kind: input, shape index: {}]
  %s3 = inlined_call_operand.hbm [shape: f32[8,128], index: 3, kind: output, shape index: {}]
  %s4 = sld [smem:[#allocation0]]
  $region34: #{tpu_custom_call.1} parent=0
    _
  %s6 = ssub.s32 1, %s4
  %s7 = scalar_select 0, %s6, %s4
  $region1: #{tpu_custom_call.1} parent=0
    #allocation2 [shape = 'u8[4096]{0}', space=vmem, size = 0x1000, scoped, tag = 'input window, operand 0, single buffered']
    #allocation3 [shape = 's32[1]{0}', space=sflag, size = 0x4, scoped, tag = 'scoped memory for tpu_custom_call.1']
    #allocation4 [shape = 's32[1]{0}', space=sflag, size = 0x4, scoped, tag = 'scoped memory for tpu_custom_call.1']
    #allocation5 [shape = 'u8[262144]{0}', space=vmem, size = 0x40000, scoped, tag = 'input window, operand 1, single buffered']
    #allocation6 [shape = 's32[1]{0}', space=sflag, size = 0x4, scoped, tag = 'scoped memory for tpu_custom_call.1']
    #allocation7 [shape = 'u8[2048]{0}', space=vmem, size = 0x800, scoped, tag = 'input window, operand 2, single buffered']
    #allocation8 [shape = 'u8[4096]{0}', space=vmem, size = 0x1000, scoped, tag = 'output window, operand 0, single buffered']
    %8 = vsyncpa [#allocation3], 0
    %9 = vsyncpa [#allocation6], 0
    %10 = vsyncpa [#allocation4], 0
    // Predicated region
    $region2: #{tpu_custom_call.1} parent=1 // pred_check
      _
    $region3: #{tpu_custom_call.1} parent=1 // pred_check_branch
      %12 = sbr.rel (0) target = $region5
    $region4: #{tpu_custom_call.1} parent=1 // pred_region
      %14 = vsyncadd [#allocation3], 0
      %s16 = sshll.u32 %s0, 4
      %s17 = int_to_ptr.hbm [resolvable:$true] %s16
      %s18 = sshll.u32 [#allocation2], 4
      %s19 = int_to_ptr.vmem [resolvable:$true] %s18
      %21 = dma.hbm_to_vmem [thread:$0]  %s17, 128, %s19, [#allocation3]
    $region5: #{tpu_custom_call.1} parent=1 // pred_fallthru
      _
    // Predicated region
    $region6: #{tpu_custom_call.1} parent=1 // pred_check
      _
    $region7: #{tpu_custom_call.1} parent=1 // pred_check_branch
      %23 = sbr.rel (0) target = $region9
    $region8: #{tpu_custom_call.1} parent=1 // pred_region
      %25 = vsyncadd [#allocation6], 0
      %s26 = sshll.u32 %s1, 4
      %s27 = int_to_ptr.hbm [resolvable:$true] %s26
      %s28 = sshll.u32 [#allocation5], 4
      %s29 = int_to_ptr.vmem [resolvable:$true] %s28
      %34 = dma.hbm_to_vmem [thread:$0]  %s27, 8192, %s29, [#allocation6], 128, 128, 8
    $region9: #{tpu_custom_call.1} parent=1 // pred_fallthru
      _
    // Predicated region
    $region10: #{tpu_custom_call.1} parent=1 // pred_check
      _
    $region11: #{tpu_custom_call.1} parent=1 // pred_check_branch
      %36 = sbr.rel (0) target = $region13
    $region12: #{tpu_custom_call.1} parent=1 // pred_region
      %38 = vsyncadd [#allocation6], 0
      %s39 = sshll.u32 %s2, 4
      %s40 = int_to_ptr.hbm [resolvable:$true] %s39
      %s41 = sshll.u32 [#allocation7], 4
      %s42 = int_to_ptr.vmem [resolvable:$true] %s41
      %47 = dma.hbm_to_vmem [thread:$0]  %s40, 64, %s42, [#allocation6], 16, 16, 1
    $region13: #{tpu_custom_call.1} parent=1 // pred_fallthru
      _
    // Predicated region
    $region14: #{tpu_custom_call.1} parent=1 // pred_check
      _
    $region15: #{tpu_custom_call.1} parent=1 // pred_check_branch
      %49 = sbr.rel (0) target = $region17
    $region16: #{tpu_custom_call.1} parent=1 // pred_region
      %51 = dma.done [#allocation3], 128
    $region17: #{tpu_custom_call.1} parent=1 // pred_fallthru
      _
    // Predicated region
    $region18: #{tpu_custom_call.1} parent=1 // pred_check
      _
    $region19: #{tpu_custom_call.1} parent=1 // pred_check_branch
      %53 = sbr.rel (0) target = $region21
    $region20: #{tpu_custom_call.1} parent=1 // pred_region
      %55 = dma.done [#allocation6], 8192
    $region21: #{tpu_custom_call.1} parent=1 // pred_fallthru
      _
    // Predicated region
    $region22: #{tpu_custom_call.1} parent=1 // pred_check
      _
    $region23: #{tpu_custom_call.1} parent=1 // pred_check_branch
      %57 = sbr.rel (0) target = $region25
    $region24: #{tpu_custom_call.1} parent=1 // pred_region
      %59 = dma.done [#allocation6], 64
    $region25: #{tpu_custom_call.1} parent=1 // pred_fallthru
      _
    %v60 = vld [vmem:[#allocation2] sm:$0xff]
    %v61 = vld [vmem:[#allocation5] sm:$0xff]
    %v62 = vld [vmem:[#allocation5 + $0x8] sm:$0xff]
    %v63 = vld [vmem:[#allocation5 + $0x10] sm:$0xff]
    %v64 = vld [vmem:[#allocation5 + $0x18] sm:$0xff]
    %v65 = vld [vmem:[#allocation5 + $0x20] sm:$0xff]
    %v66 = vld [vmem:[#allocation5 + $0x28] sm:$0xff]
    %v67 = vld [vmem:[#allocation5 + $0x30] sm:$0xff]
    %v68 = vld [vmem:[#allocation5 + $0x38] sm:$0xff]
    %v69 = vld [vmem:[#allocation5 + $0x40] sm:$0xff]
    %v70 = vld [vmem:[#allocation5 + $0x48] sm:$0xff]
    %v71 = vld [vmem:[#allocation5 + $0x50] sm:$0xff]
    %v72 = vld [vmem:[#allocation5 + $0x58] sm:$0xff]
    %v73 = vld [vmem:[#allocation5 + $0x60] sm:$0xff]
    %v74 = vld [vmem:[#allocation5 + $0x68] sm:$0xff]
    %v75 = vld [vmem:[#allocation5 + $0x70] sm:$0xff]
    %v76 = vld [vmem:[#allocation5 + $0x78] sm:$0xff]
    %v77 = vld [vmem:[#allocation7] sm:$0x1]
    %v79 = vperm.slane %v77, 0
    %81 = vmatpush.msra.mxu0 %v76
    %82 = vmatpush.msra.mxu0 %v75
    %83 = vmatpush.msra.mxu0 %v74
    %84 = vmatpush.msra.mxu0 %v73
    %85 = vmatpush.msra.mxu0 %v72
    %86 = vmatpush.msra.mxu0 %v71
    %87 = vmatpush.msra.mxu0 %v70
    %88 = vmatpush.msra.mxu0 %v69
    %89 = vmatpush.msra.mxu0 %v68
    %90 = vmatpush.msra.mxu0 %v67
    %91 = vmatpush.msra.mxu0 %v66
    %92 = vmatpush.msra.mxu0 %v65
    %93 = vmatpush.msra.mxu0 %v64
    %94 = vmatpush.msra.mxu0 %v63
    %95 = vmatpush.msra.mxu0 %v62
    %96 = vmatpush.msra.mxu0 %v61
    %97 = vmatmul.f32.gmra.mxu0 %v60
    %v98 = vpop.f32.mrf.mxu0
    %v99 = vadd.f32 %v79, %v98
    %100 = vdwg.mxu0
    %v101 = vtanh.pop %v99
    %s102 = scalar_lea.vmem [#allocation5], 128
    %v103 = vld [vmem:[%s102] sm:$0xff]
    %v104 = vld [vmem:[%s102 + $0x8] sm:$0xff]
    %v105 = vld [vmem:[%s102 + $0x10] sm:$0xff]
    %v106 = vld [vmem:[%s102 + $0x18] sm:$0xff]
    %v107 = vld [vmem:[%s102 + $0x20] sm:$0xff]
    %v108 = vld [vmem:[%s102 + $0x28] sm:$0xff]
    %v109 = vld [vmem:[%s102 + $0x30] sm:$0xff]
    %v110 = vld [vmem:[%s102 + $0x38] sm:$0xff]
    %v111 = vld [vmem:[%s102 + $0x40] sm:$0xff]
    %v112 = vld [vmem:[%s102 + $0x48] sm:$0xff]
    %v113 = vld [vmem:[%s102 + $0x50] sm:$0xff]
    %v114 = vld [vmem:[%s102 + $0x58] sm:$0xff]
    %v115 = vld [vmem:[%s102 + $0x60] sm:$0xff]
    %v116 = vld [vmem:[%s102 + $0x68] sm:$0xff]
    %v117 = vld [vmem:[%s102 + $0x70] sm:$0xff]
    %v118 = vld [vmem:[%s102 + $0x78] sm:$0xff]
    %s119 = scalar_lea.vmem [#allocation7], 1
    %v120 = vld [vmem:[%s119] sm:$0x1]
    %v122 = vperm.slane %v120, 0
    %124 = vmatpush.msra.mxu0 %v118
    %125 = vmatpush.msra.mxu0 %v117
    %126 = vmatpush.msra.mxu0 %v116
    %127 = vmatpush.msra.mxu0 %v115
    %128 = vmatpush.msra.mxu0 %v114
    %129 = vmatpush.msra.mxu0 %v113
    %130 = vmatpush.msra.mxu0 %v112
    %131 = vmatpush.msra.mxu0 %v111
    %132 = vmatpush.msra.mxu0 %v110
    %133 = vmatpush.msra.mxu0 %v109
    %134 = vmatpush.msra.mxu0 %v108
    %135 = vmatpush.msra.mxu0 %v107
    %136 = vmatpush.msra.mxu0 %v106
    %137 = vmatpush.msra.mxu0 %v105
    %138 = vmatpush.msra.mxu0 %v104
    %139 = vmatpush.msra.mxu0 %v103
    %140 = vmatmul.f32.gmra.mxu0 %v101
    %v141 = vpop.f32.mrf.mxu0
    %v142 = vadd.f32 %v122, %v141
    %143 = vdwg.mxu0
    %v144 = vtanh.pop %v142
    %s145 = scalar_lea.vmem [#allocation5], 256
    %v146 = vld [vmem:[%s145] sm:$0xff]
    %v147 = vld [vmem:[%s145 + $0x8] sm:$0xff]
    %v148 = vld [vmem:[%s145 + $0x10] sm:$0xff]
    %v149 = vld [vmem:[%s145 + $0x18] sm:$0xff]
    %v150 = vld [vmem:[%s145 + $0x20] sm:$0xff]
    %v151 = vld [vmem:[%s145 + $0x28] sm:$0xff]
    %v152 = vld [vmem:[%s145 + $0x30] sm:$0xff]
    %v153 = vld [vmem:[%s145 + $0x38] sm:$0xff]
    %v154 = vld [vmem:[%s145 + $0x40] sm:$0xff]
    %v155 = vld [vmem:[%s145 + $0x48] sm:$0xff]
    %v156 = vld [vmem:[%s145 + $0x50] sm:$0xff]
    %v157 = vld [vmem:[%s145 + $0x58] sm:$0xff]
    %v158 = vld [vmem:[%s145 + $0x60] sm:$0xff]
    %v159 = vld [vmem:[%s145 + $0x68] sm:$0xff]
    %v160 = vld [vmem:[%s145 + $0x70] sm:$0xff]
    %v161 = vld [vmem:[%s145 + $0x78] sm:$0xff]
    %s162 = scalar_lea.vmem [#allocation7], 2
    %v163 = vld [vmem:[%s162] sm:$0x1]
    %v165 = vperm.slane %v163, 0
    %167 = vmatpush.msra.mxu0 %v161
    %168 = vmatpush.msra.mxu0 %v160
    %169 = vmatpush.msra.mxu0 %v159
    %170 = vmatpush.msra.mxu0 %v158
    %171 = vmatpush.msra.mxu0 %v157
    %172 = vmatpush.msra.mxu0 %v156
    %173 = vmatpush.msra.mxu0 %v155
    %174 = vmatpush.msra.mxu0 %v154
    %175 = vmatpush.msra.mxu0 %v153
    %176 = vmatpush.msra.mxu0 %v152
    %177 = vmatpush.msra.mxu0 %v151
    %178 = vmatpush.msra.mxu0 %v150
    %179 = vmatpush.msra.mxu0 %v149
    %180 = vmatpush.msra.mxu0 %v148
    %181 = vmatpush.msra.mxu0 %v147
    %182 = vmatpush.msra.mxu0 %v146
    %183 = vmatmul.f32.gmra.mxu0 %v144
    %v184 = vpop.f32.mrf.mxu0
    %v185 = vadd.f32 %v165, %v184
    %186 = vdwg.mxu0
    %v187 = vtanh.pop %v185
    %s188 = scalar_lea.vmem [#allocation5], 384
    %v189 = vld [vmem:[%s188] sm:$0xff]
    %v190 = vld [vmem:[%s188 + $0x8] sm:$0xff]
    %v191 = vld [vmem:[%s188 + $0x10] sm:$0xff]
    %v192 = vld [vmem:[%s188 + $0x18] sm:$0xff]
    %v193 = vld [vmem:[%s188 + $0x20] sm:$0xff]
    %v194 = vld [vmem:[%s188 + $0x28] sm:$0xff]
    %v195 = vld [vmem:[%s188 + $0x30] sm:$0xff]
    %v196 = vld [vmem:[%s188 + $0x38] sm:$0xff]
    %v197 = vld [vmem:[%s188 + $0x40] sm:$0xff]
    %v198 = vld [vmem:[%s188 + $0x48] sm:$0xff]
    %v199 = vld [vmem:[%s188 + $0x50] sm:$0xff]
    %v200 = vld [vmem:[%s188 + $0x58] sm:$0xff]
    %v201 = vld [vmem:[%s188 + $0x60] sm:$0xff]
    %v202 = vld [vmem:[%s188 + $0x68] sm:$0xff]
    %v203 = vld [vmem:[%s188 + $0x70] sm:$0xff]
    %v204 = vld [vmem:[%s188 + $0x78] sm:$0xff]
    %s205 = scalar_lea.vmem [#allocation7], 3
    %v206 = vld [vmem:[%s205] sm:$0x1]
    %v208 = vperm.slane %v206, 0
    %210 = vmatpush.msra.mxu0 %v204
    %211 = vmatpush.msra.mxu0 %v203
    %212 = vmatpush.msra.mxu0 %v202
    %213 = vmatpush.msra.mxu0 %v201
    %214 = vmatpush.msra.mxu0 %v200
    %215 = vmatpush.msra.mxu0 %v199
    %216 = vmatpush.msra.mxu0 %v198
    %217 = vmatpush.msra.mxu0 %v197
    %218 = vmatpush.msra.mxu0 %v196
    %219 = vmatpush.msra.mxu0 %v195
    %220 = vmatpush.msra.mxu0 %v194
    %221 = vmatpush.msra.mxu0 %v193
    %222 = vmatpush.msra.mxu0 %v192
    %223 = vmatpush.msra.mxu0 %v191
    %224 = vmatpush.msra.mxu0 %v190
    %225 = vmatpush.msra.mxu0 %v189
    %226 = vmatmul.f32.gmra.mxu0 %v187
    %v227 = vpop.f32.mrf.mxu0
    %v228 = vadd.f32 %v208, %v227
    %229 = vdwg.mxu0
    %230 = vmax.xlane.f32.xlu0 %v228
    %v231 = vpop.xlane.xlu0 %230
    %v232 = vsub.f32 %v228, %v231
    %v233 = vmul.f32 %v232, 1.442695
    %v234 = vpow.pop %v233
    %235 = vadd.xlane.f32.xlu0 %v234
    %v236 = vpop.xlane.xlu0 %235
    %v237 = vlog2.pop %v236
    %v238 = vmul.f32 %v237, 0.6931472
    %v239 = vsub.f32 %v232, %v238
    %240 = vst [vmem:[#allocation8] sm:$0xff] %v239
    // Predicated region
    $region26: #{tpu_custom_call.1} parent=1 // pred_check
      _
    $region27: #{tpu_custom_call.1} parent=1 // pred_check_branch
      %242 = sbr.rel (0) target = $region29
    $region28: #{tpu_custom_call.1} parent=1 // pred_region
      %244 = vsyncadd [#allocation4], 0
      %s246 = sshll.u32 [#allocation8], 4
      %s247 = int_to_ptr.vmem [resolvable:$true] %s246
      %s248 = sshll.u32 %s3, 4
      %s249 = int_to_ptr.hbm [resolvable:$true] %s248
      %251 = dma.vmem_to_hbm [thread:$0]  %s247, 128, %s249, [#allocation4]
    $region29: #{tpu_custom_call.1} parent=1 // pred_fallthru
      _
    // Predicated region
    $region30: #{tpu_custom_call.1} parent=1 // pred_check
      _
    $region31: #{tpu_custom_call.1} parent=1 // pred_check_branch
      %253 = sbr.rel (0) target = $region33
    $region32: #{tpu_custom_call.1} parent=1 // pred_region
      %255 = dma.done [#allocation4], 128
    $region33: #{tpu_custom_call.1} parent=1 // pred_fallthru
      _
    %256 = vsyncpa [#allocation3], 1
    %257 = vsyncpa [#allocation6], 1
    %258 = vsyncpa [#allocation4], 1

</llo_original>
